<compile_context>
chip_gen: v7x
topology: tpu7x:2x2x1
jax: 0.10.0
libtpu: 0.0.40
codegen_flags: <defaults>
</compile_context>

<pallas_src>
import functools

import jax
import jax.numpy as jnp
from jax.experimental import pallas as pl
from jax.experimental.pallas import tpu as pltpu
from jax.scipy.linalg import solve_triangular

# --- cfg.params.* constants, baked deterministically in-script ----------------------
T_SEC        = 3600.0    # self.t (routing timestep, seconds)
VELOCITY_LB  = 0.3       # attribute_minimums.velocity
DEPTH_LB     = 0.01      # attribute_minimums.depth (passed to _get_velocity but unused there)
DISCHARGE_LB = 1e-4      # attribute_minimums.discharge
SLOPE_MIN    = 1e-4      # attribute_minimums.slope
PARAM_BOUNDS = {         # parameter_ranges.range
    "n":         (0.01, 0.30),
    "q_spatial": (1.5, 3.0),
    "p_spatial": (1.0, 4.0),
}


def denormalize(value, bounds):
    lo, hi = bounds
    return value * (hi - lo) + lo


def _round_up(x, m):
    return ((x + m - 1) // m) * m


# -------------------------------------------------------------------------------------
# Time-invariant precompute (plain JAX, runs once per forward call, outside the kernel)
# -------------------------------------------------------------------------------------
def _precompute_propagators(adjacency, n, q_spatial, p_spatial, x_storage,
                            length, slope, width):
    """Fold velocity, Muskingum coefficients and the triangular solve into two (N,N)
    row-vector propagators M1, M2 so that q_{t+1} = max(q_t @ M1 + q_l @ M2, lb)."""
    f32 = jnp.float32
    adjacency = jnp.asarray(adjacency, f32)
    n         = jnp.asarray(n, f32)
    q_spatial = jnp.asarray(q_spatial, f32)
    p_spatial = jnp.asarray(p_spatial, f32)
    x_storage = jnp.asarray(x_storage, f32)
    length    = jnp.asarray(length, f32)
    slope     = jnp.maximum(jnp.asarray(slope, f32), SLOPE_MIN)
    width     = jnp.asarray(width, f32)

    # _get_velocity (Manning): depth = log_{q_spatial}(width / p_spatial)
    # NOTE: torch reference does NOT clamp depth with DEPTH_LB, so neither do we.
    depth = jnp.log(width / p_spatial) / jnp.log(q_spatial)
    v = (1.0 / n) * depth ** (2.0 / 3.0) * jnp.sqrt(slope)
    c = jnp.clip(v, VELOCITY_LB, 15.0) * (5.0 / 3.0)

    # Muskingum–Cunge coefficients (time-invariant: velocity does not use discharge_t)
    k = length / c
    denom = 2.0 * k * (1.0 - x_storage) + T_SEC
    c1 = (T_SEC - 2.0 * k * x_storage) / denom
    c2 = (T_SEC + 2.0 * k * x_storage) / denom
    c3 = (2.0 * k * (1.0 - x_storage) - T_SEC) / denom
    c4 = 2.0 * T_SEC / denom
    c1_neg = (-c1).at[0].set(1.0)            # c_1_ = -c_1 ; c_1_[0] = 1.0

    N = adjacency.shape[0]
    eye = jnp.eye(N, dtype=f32)
    A_low = eye + c1_neg[:, None] * adjacency                 # unit lower-triangular
    S = solve_triangular(A_low, eye, lower=True)              # exact inverse (nilpotent part)
    P1 = jnp.matmul(S, c2[:, None] * adjacency + jnp.diag(c3),
                    precision=jax.lax.Precision.HIGHEST)      # one-time cost, keep f32-exact
    P2 = S * c4[None, :]                                      # S @ diag(c4)
    return P1.T, P2.T                                         # row-vector form


# -------------------------------------------------------------------------------------
# Pallas kernel: T-chunked grid, batched lateral GEMM + serial matvec recurrence
# -------------------------------------------------------------------------------------
def dmc_kernel(q0_ref, qlat_ref, m1_hbm, m2_hbm, out_ref,
               m1_vmem, m2_vmem, lat_ref, state_ref, dma_sem, *, gage_block):
    chunk = pl.program_id(0)
    ts_chunk = qlat_ref.shape[0]

    # --- chunk 0: single-buffer the constant propagators (one DMA each, persistent VMEM
    #     scratch — no double-buffered weight copies) and initialize the carried state. ---
    @pl.when(chunk == 0)
    def _():
        cp1 = pltpu.make_async_copy(m1_hbm, m1_vmem, dma_sem.at[0])
        cp2 = pltpu.make_async_copy(m2_hbm, m2_vmem, dma_sem.at[1])
        cp1.start()
        cp2.start()
        state_ref[...] = q0_ref[...]          # discharge state at global ts=0 (f32, unclamped)
        cp1.wait()
        cp2.wait()

    # --- batched lateral GEMM for this chunk (off the serial path, MXU-efficient shape):
    #     lat[j] = clamp(q_prime[global_ts-1], lb) @ M2  for every step j of the chunk. ---
    lat_ref[...] = jnp.dot(qlat_ref[...], m2_vmem[...],
                           preferred_element_type=jnp.float32)

    m1 = m1_vmem[...]                          # hoisted out of the loop body (bf16)

    def step(j, q_t):
        # serial Muskingum–Cunge recurrence: one (1,N)x(N,N) matvec + add + clamp
        q_new = jnp.maximum(
            jnp.dot(q_t.astype(jnp.bfloat16), m1,
                    preferred_element_type=jnp.float32)
            + lat_ref[pl.ds(j, 1), :],
            DISCHARGE_LB)
        # O(1) output: store the 128-lane block holding the gage reach at sublane j
        out_ref[pl.ds(j, 1), :] = q_new[:, gage_block:gage_block + 128]
        return q_new

    q_final = jax.lax.fori_loop(0, ts_chunk, step, state_ref[...])
    state_ref[...] = q_final                   # carry the state into the next chunk


def dmc_forward(q_prime, adjacency, n, q_spatial, p_spatial, x_storage,
                length, slope, width, *, max_chunk=256):
    """Pallas implementation of dmc.forward.  Returns {'runoff': [n_gages=1, T]}."""
    f32 = jnp.float32
    q_prime = jnp.asarray(q_prime, f32)
    T, N = q_prime.shape

    gage_col = N - 1                                      # gage_indices = [-1]
    head = jnp.maximum(q_prime[0, gage_col], DISCHARGE_LB).reshape(1)   # output[:, 0]
    if T == 1:
        return {"runoff": head.reshape(1, 1)}

    M1, M2 = _precompute_propagators(adjacency, n, q_spatial, p_spatial, x_storage,
                                     length, slope, width)

    # pad reach axis to a multiple of 128 lanes; padded propagator rows/cols stay exactly 0
    # (also after the bf16 cast), so padded lanes remain inert through the recurrence.
    n_pad = _round_up(N, 128)
    pad_n = n_pad - N
    gage_block = (gage_col // 128) * 128                  # lane-aligned block with the gage

    # routed steps handled in the kernel: global ts = 1 .. T-1, chunked into TS-row tiles
    T_route = T - 1
    ts_chunk = int(min(max_chunk, _round_up(T_route, 8)))
    t_pad = _round_up(T_route, ts_chunk)
    n_chunks = t_pad // ts_chunk

    # inputs: initial state (f32, exact), globally shifted+clamped laterals (bf16),
    #         bf16 propagators (DMA'd once into VMEM scratch by the kernel).
    q0 = jnp.pad(q_prime[0:1, :], ((0, 0), (0, pad_n)))                      # (1, n_pad) f32
    q_lat = jnp.maximum(q_prime[:T_route, :], DISCHARGE_LB)                  # q_l for ts=1..T-1
    q_lat = jnp.pad(q_lat, ((0, t_pad - T_route), (0, pad_n))).astype(jnp.bfloat16)
    m1 = jnp.pad(M1, ((0, pad_n), (0, pad_n))).astype(jnp.bfloat16)
    m2 = jnp.pad(M2, ((0, pad_n), (0, pad_n))).astype(jnp.bfloat16)

    # VMEM budget from the actual block/scratch sizes (not hardcoded)
    vmem_bytes = (
        2 * ts_chunk * n_pad * 2        # q_lat block, double-buffered, bf16
        + 2 * 8 * n_pad * 4             # q0 block (sublane-padded), double-buffered, f32
        + 2 * ts_chunk * 128 * 4        # output block, double-buffered, f32
        + 2 * n_pad * n_pad * 2         # M1 + M2, single-buffered bf16 scratch
        + ts_chunk * n_pad * 4          # lateral GEMM scratch, f32
        + 8 * n_pad * 4                 # carried state scratch
    )
    vmem_limit = max(int(vmem_bytes * 1.5) + (4 << 20), 32 << 20)

    grid_spec = pltpu.PrefetchScalarGridSpec(
        num_scalar_prefetch=0,
        grid=(n_chunks,),                                       # sequential time chunks
        in_specs=[
            pl.BlockSpec((1, n_pad), lambda i: (0, 0)),         # q_prime[0] (initial state)
            pl.BlockSpec((ts_chunk, n_pad), lambda i: (i, 0)),  # lateral inflow chunk (pipelined)
            pl.BlockSpec(memory_space=pl.ANY),                  # M1 (HBM; manual one-shot DMA)
            pl.BlockSpec(memory_space=pl.ANY),                  # M2 (HBM; manual one-shot DMA)
        ],
        out_specs=pl.BlockSpec((ts_chunk, 128), lambda i: (i, 0)),  # per-step gage block
        scratch_shapes=[
            pltpu.VMEM((n_pad, n_pad), jnp.bfloat16),           # M1, single-buffered
            pltpu.VMEM((n_pad, n_pad), jnp.bfloat16),           # M2, single-buffered
            pltpu.VMEM((ts_chunk, n_pad), jnp.float32),         # batched lateral term
            pltpu.VMEM((1, n_pad), jnp.float32),                # carried discharge state
            pltpu.SemaphoreType.DMA((2,)),
        ],
    )
    out = pl.pallas_call(
        functools.partial(dmc_kernel, gage_block=gage_block),
        out_shape=jax.ShapeDtypeStruct((t_pad, 128), f32),
        grid_spec=grid_spec,
        compiler_params=pltpu.CompilerParams(
            dimension_semantics=("arbitrary",),
            vmem_limit_bytes=vmem_limit),
    )(q0, q_lat, m1, m2)

    tail = out[:T_route, gage_col - gage_block]                 # global ts = 1 .. T-1
    runoff = jnp.concatenate([head, tail]).reshape(1, T)
    return {"runoff": runoff}


# -------------------------------------------------------------------------------------
# Pure-JAX references for checking
# -------------------------------------------------------------------------------------
def dmc_reference(q_prime, adjacency, n, q_spatial, p_spatial, x_storage,
                  length, slope, width):
    """Mirror of the torch forward: per-step coefficients + forward substitution of the
    unit lower-triangular system (no MXU matmuls, so it is f32-accurate)."""
    T, N = q_prime.shape
    slope = jnp.maximum(slope, SLOPE_MIN)
    depth = jnp.log(width / p_spatial) / jnp.log(q_spatial)
    v = (1.0 / n) * depth ** (2.0 / 3.0) * jnp.sqrt(slope)
    c = jnp.clip(v, VELOCITY_LB, 15.0) * (5.0 / 3.0)
    k = length / c
    denom = 2.0 * k * (1.0 - x_storage) + T_SEC
    c1 = (T_SEC - 2.0 * k * x_storage) / denom
    c2 = (T_SEC + 2.0 * k * x_storage) / denom
    c3 = (2.0 * k * (1.0 - x_storage) - T_SEC) / denom
    c4 = 2.0 * T_SEC / denom
    c1_ = (-c1).at[0].set(1.0)
    L = c1_[:, None] * adjacency             # off-diagonal part of A = I + L (strictly lower)

    disch = q_prime[0]
    outs = [jnp.maximum(disch[-1], DISCHARGE_LB)]
    for ts in range(1, T):
        q_l = jnp.maximum(q_prime[ts - 1], DISCHARGE_LB)
        i_t = jnp.sum(adjacency * disch[None, :], axis=1)
        b = c2 * i_t + c3 * disch + c4 * q_l
        xs = []
        for i in range(N):                   # forward substitution, exact
            acc = b[i]
            if i > 0:
                acc = acc - jnp.sum(L[i, :i] * jnp.stack(xs))
            xs.append(acc)
        disch = jnp.maximum(jnp.stack(xs), DISCHARGE_LB)
        outs.append(disch[-1])
    return jnp.stack(outs).reshape(1, T)


def propagator_reference(q_prime, M1, M2):
    """Same propagator recurrence as the kernel, run at HIGHEST precision — used to prove
    the propagator reformulation is exactly the triangular solve."""
    T, _ = q_prime.shape
    q_t = q_prime[0]
    outs = [jnp.maximum(q_t[-1], DISCHARGE_LB)]
    for ts in range(1, T):
        q_l = jnp.maximum(q_prime[ts - 1], DISCHARGE_LB)
        q_t = jnp.maximum(
            jnp.matmul(q_t, M1, precision=jax.lax.Precision.HIGHEST)
            + jnp.matmul(q_l, M2, precision=jax.lax.Precision.HIGHEST),
            DISCHARGE_LB)
        outs.append(q_t[-1])
    return jnp.stack(outs).reshape(1, T)


if __name__ == "__main__":
    key = jax.random.PRNGKey(0)
    T, N = 8, 16          # timesteps, river reaches
    ks = jax.random.split(key, 8)

    q_prime = jax.random.uniform(ks[0], (T, N), jnp.float32, 0.5, 10.0)

    # strictly-lower-triangular, topologically-sorted river network (chain + 2 confluences)
    adjacency = jnp.zeros((N, N), jnp.float32)
    adjacency = adjacency.at[jnp.arange(1, N), jnp.arange(0, N - 1)].set(1.0)
    adjacency = adjacency.at[8, 3].set(1.0).at[12, 6].set(1.0)

    # "spatial_parameters" from the NN are in [0, 1]; denormalize with the cfg bounds
    n         = denormalize(jax.random.uniform(ks[1], (N,), jnp.float32), PARAM_BOUNDS["n"])
    q_spatial = denormalize(jax.random.uniform(ks[2], (N,), jnp.float32), PARAM_BOUNDS["q_spatial"])
    p_spatial = denormalize(jax.random.uniform(ks[3], (N,), jnp.float32), PARAM_BOUNDS["p_spatial"])

    x_storage = jnp.full((N,), 0.3, jnp.float32)   # Muskingum X (set externally on the torch module)
    length = jax.random.uniform(ks[4], (N,), jnp.float32, 1000.0, 5000.0)
    slope  = jnp.maximum(jax.random.uniform(ks[5], (N,), jnp.float32, 1e-3, 1e-2), SLOPE_MIN)
    # TODO(synk): the reference forward calls _get_velocity without passing `width`;
    #             treat width as a static per-reach hydrofabric attribute here.
    width  = jax.random.uniform(ks[6], (N,), jnp.float32, 5.0, 20.0)

    out = dmc_forward(q_prime, adjacency, n, q_spatial, p_spatial, x_storage,
                      length, slope, width)
    runoff = jax.block_until_ready(out["runoff"])
    assert runoff.shape == (1, T)

    # 1) propagator reformulation == torch-style triangular solve (tight, f32)
    M1, M2 = _precompute_propagators(adjacency, n, q_spatial, p_spatial, x_storage,
                                     length, slope, width)
    prop = propagator_reference(q_prime, M1, M2)
    ref = dmc_reference(q_prime, adjacency, n, q_spatial, p_spatial, x_storage,
                        length, slope, width)
    assert bool(jnp.allclose(prop, ref, rtol=1e-3, atol=1e-3)), (
        f"propagator reformulation mismatch: {float(jnp.max(jnp.abs(prop - ref)))}")

    # 2) Pallas kernel vs reference (kernel runs bf16 operands with f32 accumulation —
    #    same as default MXU precision on f32 inputs — hence the looser tolerance)
    err = float(jnp.max(jnp.abs(runoff - ref)))
    assert bool(jnp.allclose(runoff, ref, rtol=3e-2, atol=3e-2)), (
        f"mismatch vs reference: max abs err = {err}")
    print("KERNEL_OK")
</pallas_src>

<mosaic_0001>
module attributes {stable_mosaic.version = 11 : i64} {
  func.func @dmc_kernel(%arg0: i32, %arg1: memref<1x128xf32, #tpu.memory_space<vmem>>, %arg2: memref<8x128xbf16, #tpu.memory_space<vmem>>, %arg3: memref<128x128xbf16, #tpu.memory_space<any>>, %arg4: memref<128x128xbf16, #tpu.memory_space<any>>, %arg5: memref<8x128xf32, #tpu.memory_space<vmem>>, %arg6: memref<128x128xbf16, #tpu.memory_space<vmem>>, %arg7: memref<128x128xbf16, #tpu.memory_space<vmem>>, %arg8: memref<8x128xf32, #tpu.memory_space<vmem>>, %arg9: memref<1x128xf32, #tpu.memory_space<vmem>>, %arg10: memref<2x!tpu.dma_semaphore, #tpu.memory_space<semaphore_mem>>) attributes {dimension_semantics = [#tpu.dimension_semantics<arbitrary>], iteration_bounds = array<i64: 1>, scalar_prefetch = 0 : i64, scratch_operands = 5 : i64, tpu.core_type = #tpu.core_type<tc>, window_params = [{pipeline_mode = #tpu.pipeline_mode<synchronous>, transform_indices = @transform_0, window_bounds = array<i64: 1, 128>}, {transform_indices = @transform_1, window_bounds = array<i64: 8, 128>}, {}, {}, {transform_indices = @transform_4, window_bounds = array<i64: 8, 128>}]} {
    %c0_i32 = arith.constant 0 : i32
    %0 = arith.cmpi eq, %arg0, %c0_i32 : i32
    %1 = arith.extui %0 : i1 to i32
    %c0_i32_0 = arith.constant 0 : i32
    %2 = arith.cmpi ne, %1, %c0_i32_0 : i32
    scf.if %2 {
      %c0_i32_14 = arith.constant 0 : i32
      %12 = tpu.memref_slice %arg10[%c0_i32_14] : memref<2x!tpu.dma_semaphore, #tpu.memory_space<semaphore_mem>> -> memref<1x!tpu.dma_semaphore, #tpu.memory_space<semaphore_mem>>
      %13 = tpu.memref_squeeze %12 : memref<1x!tpu.dma_semaphore, #tpu.memory_space<semaphore_mem>> -> memref<!tpu.dma_semaphore, #tpu.memory_space<semaphore_mem>>
      tpu.enqueue_dma source(%arg3 : memref<128x128xbf16, #tpu.memory_space<any>>) target(%arg6 : memref<128x128xbf16, #tpu.memory_space<vmem>>) target_semaphore(%13 : memref<!tpu.dma_semaphore, #tpu.memory_space<semaphore_mem>>)
      %c1_i32_15 = arith.constant 1 : i32
      %14 = tpu.memref_slice %arg10[%c1_i32_15] : memref<2x!tpu.dma_semaphore, #tpu.memory_space<semaphore_mem>> -> memref<1x!tpu.dma_semaphore, #tpu.memory_space<semaphore_mem>>
      %15 = tpu.memref_squeeze %14 : memref<1x!tpu.dma_semaphore, #tpu.memory_space<semaphore_mem>> -> memref<!tpu.dma_semaphore, #tpu.memory_space<semaphore_mem>>
      tpu.enqueue_dma source(%arg4 : memref<128x128xbf16, #tpu.memory_space<any>>) target(%arg7 : memref<128x128xbf16, #tpu.memory_space<vmem>>) target_semaphore(%15 : memref<!tpu.dma_semaphore, #tpu.memory_space<semaphore_mem>>)
      %c0_16 = arith.constant 0 : index
      %c0_17 = arith.constant 0 : index
      %16 = vector.load %arg1[%c0_16, %c0_17] : memref<1x128xf32, #tpu.memory_space<vmem>>, vector<1x128xf32>
      %c0_18 = arith.constant 0 : index
      %c0_19 = arith.constant 0 : index
      %17 = vector.load %arg9[%c0_18, %c0_19] : memref<1x128xf32, #tpu.memory_space<vmem>>, vector<1x128xf32>
      tpu.vector_store %arg9[%c0_18, %c0_19], %16 {strides = array<i32>} : memref<1x128xf32, #tpu.memory_space<vmem>>, vector<1x128xf32>,
      %c0_i32_20 = arith.constant 0 : i32
      %18 = tpu.memref_slice %arg10[%c0_i32_20] : memref<2x!tpu.dma_semaphore, #tpu.memory_space<semaphore_mem>> -> memref<1x!tpu.dma_semaphore, #tpu.memory_space<semaphore_mem>>
      %19 = tpu.memref_squeeze %18 : memref<1x!tpu.dma_semaphore, #tpu.memory_space<semaphore_mem>> -> memref<!tpu.dma_semaphore, #tpu.memory_space<semaphore_mem>>
      tpu.wait_dma2 semaphore(%19 : memref<!tpu.dma_semaphore, #tpu.memory_space<semaphore_mem>>) src(%arg3 : memref<128x128xbf16, #tpu.memory_space<any>>) dst(%arg6 : memref<128x128xbf16, #tpu.memory_space<vmem>>)
      %c1_i32_21 = arith.constant 1 : i32
      %20 = tpu.memref_slice %arg10[%c1_i32_21] : memref<2x!tpu.dma_semaphore, #tpu.memory_space<semaphore_mem>> -> memref<1x!tpu.dma_semaphore, #tpu.memory_space<semaphore_mem>>
      %21 = tpu.memref_squeeze %20 : memref<1x!tpu.dma_semaphore, #tpu.memory_space<semaphore_mem>> -> memref<!tpu.dma_semaphore, #tpu.memory_space<semaphore_mem>>
      tpu.wait_dma2 semaphore(%21 : memref<!tpu.dma_semaphore, #tpu.memory_space<semaphore_mem>>) src(%arg4 : memref<128x128xbf16, #tpu.memory_space<any>>) dst(%arg7 : memref<128x128xbf16, #tpu.memory_space<vmem>>)
    } else {
    }
    %c0 = arith.constant 0 : index
    %c0_1 = arith.constant 0 : index
    %3 = vector.load %arg2[%c0, %c0_1] : memref<8x128xbf16, #tpu.memory_space<vmem>>, vector<8x128xbf16>
    %c0_2 = arith.constant 0 : index
    %c0_3 = arith.constant 0 : index
    %4 = vector.load %arg7[%c0_2, %c0_3] : memref<128x128xbf16, #tpu.memory_space<vmem>>, vector<128x128xbf16>
    %cst = arith.constant dense<0.000000e+00> : vector<8x128xf32>
    %5 = tpu.matmul %3, %4, %cst {dimension_numbers = #tpu.dot_dimension_numbers<[1], [0], [0], [1], [0, 0, 1, 1], [], []>} : vector<8x128xbf16>, vector<128x128xbf16>, vector<8x128xf32> -> vector<8x128xf32>
    %c0_4 = arith.constant 0 : index
    %c0_5 = arith.constant 0 : index
    %6 = vector.load %arg8[%c0_4, %c0_5] : memref<8x128xf32, #tpu.memory_space<vmem>>, vector<8x128xf32>
    tpu.vector_store %arg8[%c0_4, %c0_5], %5 {strides = array<i32>} : memref<8x128xf32, #tpu.memory_space<vmem>>, vector<8x128xf32>,
    %c0_6 = arith.constant 0 : index
    %c0_7 = arith.constant 0 : index
    %7 = vector.load %arg6[%c0_6, %c0_7] : memref<128x128xbf16, #tpu.memory_space<vmem>>, vector<128x128xbf16>
    %c0_8 = arith.constant 0 : index
    %c0_9 = arith.constant 0 : index
    %8 = vector.load %arg9[%c0_8, %c0_9] : memref<1x128xf32, #tpu.memory_space<vmem>>, vector<1x128xf32>
    %c0_i32_10 = arith.constant 0 : i32
    %c8_i32 = arith.constant 8 : i32
    %9 = arith.addi %c0_i32_10, %c8_i32 : i32
    %c1_i32 = arith.constant 1 : i32
    %10 = scf.for %arg11 = %c0_i32_10 to %9 step %c1_i32 iter_args(%arg12 = %8) -> (vector<1x128xf32>)  : i32 {
      %12 = arith.truncf %arg12 : vector<1x128xf32> to vector<1x128xbf16>
      %cst_14 = arith.constant dense<0.000000e+00> : vector<1x128xf32>
      %13 = tpu.matmul %12, %7, %cst_14 {dimension_numbers = #tpu.dot_dimension_numbers<[1], [0], [0], [1], [0, 0, 1, 1], [], []>} : vector<1x128xbf16>, vector<128x128xbf16>, vector<1x128xf32> -> vector<1x128xf32>
      %14 = arith.index_cast %arg11 : i32 to index
      %c0_15 = arith.constant 0 : index
      %15 = vector.load %arg8[%14, %c0_15] : memref<8x128xf32, #tpu.memory_space<vmem>>, vector<1x128xf32>
      %16 = arith.addf %13, %15 : vector<1x128xf32>
      %cst_16 = arith.constant 9.99999974E-5 : f32
      %17 = vector.broadcast %cst_16 : f32 to vector<1x128xf32>
      %18 = arith.maximumf %16, %17 : vector<1x128xf32>
      %19 = arith.index_cast %arg11 : i32 to index
      %c0_17 = arith.constant 0 : index
      %20 = vector.load %arg5[%19, %c0_17] : memref<8x128xf32, #tpu.memory_space<vmem>>, vector<1x128xf32>
      tpu.vector_store %arg5[%19, %c0_17], %18 {strides = array<i32>} : memref<8x128xf32, #tpu.memory_space<vmem>>, vector<1x128xf32>,
      scf.yield %18 : vector<1x128xf32>
    }
    %c8_i32_11 = arith.constant 8 : i32
    %c0_12 = arith.constant 0 : index
    %c0_13 = arith.constant 0 : index
    %11 = vector.load %arg9[%c0_12, %c0_13] : memref<1x128xf32, #tpu.memory_space<vmem>>, vector<1x128xf32>
    tpu.vector_store %arg9[%c0_12, %c0_13], %10 {strides = array<i32>} : memref<1x128xf32, #tpu.memory_space<vmem>>, vector<1x128xf32>,
    return
  }
  func.func @transform_0(%arg0: i32) -> (i32, i32) {
    %c0_i32 = arith.constant 0 : i32
    %c0_i32_0 = arith.constant 0 : i32
    %c0_i32_1 = arith.constant 0 : i32
    return %c0_i32, %c0_i32_0 : i32, i32
  }
  func.func @transform_1(%arg0: i32) -> (i32, i32) {
    %c0_i32 = arith.constant 0 : i32
    %c0_i32_0 = arith.constant 0 : i32
    return %arg0, %c0_i32 : i32, i32
  }
  func.func @transform_4(%arg0: i32) -> (i32, i32) {
    %c0_i32 = arith.constant 0 : i32
    %c0_i32_0 = arith.constant 0 : i32
    return %arg0, %c0_i32 : i32, i32
  }
}

</mosaic_0001>

<llo_original>
// kernel: tpu_custom_call.1
$region0: #{tpu_custom_call.1}
  #allocation0 [shape = 'u32[]', space=smem, size = 0x4, offset = 0x4, fixed_abs, tag = 'smem constant byte address 0x4 - core index']
  #allocation1 [shape = 'u32[144,128]{1,0:T(1,128)}', space=vmem, size = 0x12000, scoped, tag = 'internal scratch']
  #allocation2 [shape = 'bf16[128,128]{1,0:T(16,128)(2,1)}', space=vmem, size = 0x8000, scoped, tag = 'scratch operand']
  #allocation3 [shape = 'bf16[128,128]{1,0:T(16,128)(2,1)}', space=vmem, size = 0x8000, scoped, tag = 'scratch operand']
  #allocation4 [shape = 'f32[8,128]{1,0:T(8,128)}', space=vmem, size = 0x1000, scoped, tag = 'scratch operand']
  #allocation5 [shape = 'f32[1,128]{1,0:T(1,128)}', space=vmem, size = 0x200, scoped, tag = 'scratch operand']
  #allocation6 [shape = 's32[2]{0}', space=sflag, size = 0x8, scoped, tag = 'scratch operand']
  #allocation13 [shape = 's32[]', space=sflag, size = 0x4, offset = 0, fixed_abs, tag = 'sflag constant byte address 0x0 - dummy sync flag']
  #allocation14 [shape = 's32[]', space=sflag, size = 0x4, offset = 0, fixed_abs, tag = 'sflag constant byte address 0x0 - dummy sync flag']
  #allocation15 [shape = 'u32[]', space=smem, size = 0x4, offset = 0x44, fixed_abs, tag = 'smem constant byte address 0x44 - assertion arg 0']
  #allocation16 [shape = 'u32[]', space=smem, size = 0x4, offset = 0x48, fixed_abs, tag = 'smem constant byte address 0x48 - assertion arg 1']
  #allocation17 [shape = 's32[]', space=sflag, size = 0x4, offset = 0, fixed_abs, tag = 'sflag constant byte address 0x0 - dummy sync flag']
  #allocation18 [shape = 's32[]', space=sflag, size = 0x4, offset = 0, fixed_abs, tag = 'sflag constant byte address 0x0 - dummy sync flag']
  %s0 = inlined_call_operand.hbm [shape: f32[1,128], index: 0, kind: input, shape index: {}]
  %s1 = inlined_call_operand.hbm [shape: bf16[8,128], index: 1, kind: input, shape index: {}]
  %s2 = inlined_call_operand.hbm [shape: bf16[128,128], index: 2, kind: input, shape index: {}]
  %s3 = inlined_call_operand.hbm [shape: bf16[128,128], index: 3, kind: input, shape index: {}]
  %s4 = inlined_call_operand.hbm [shape: f32[8,128], index: 4, kind: output, shape index: {}]
  %s5 = sld [smem:[#allocation0]]
  $region45: #{tpu_custom_call.1} parent=0
    _
  %s7 = ssub.s32 1, %s5
  %s8 = scalar_select 0, %s7, %s5
  $region1: #{tpu_custom_call.1} parent=0
    #allocation7 [shape = 'u8[512]{0}', space=vmem, size = 0x400, scoped, tag = 'input window, operand 0, single buffered']
    #allocation8 [shape = 's32[1]{0}', space=sflag, size = 0x4, scoped, tag = 'scoped memory for tpu_custom_call.1']
    #allocation9 [shape = 's32[1]{0}', space=sflag, size = 0x4, scoped, tag = 'scoped memory for tpu_custom_call.1']
    #allocation10 [shape = 'u8[2048]{0}', space=vmem, size = 0x800, scoped, tag = 'input window, operand 1, single buffered']
    #allocation11 [shape = 's32[1]{0}', space=sflag, size = 0x4, scoped, tag = 'scoped memory for tpu_custom_call.1']
    #allocation12 [shape = 'u8[4096]{0}', space=vmem, size = 0x1000, scoped, tag = 'output window, operand 0, single buffered']
    %9 = vsyncpa [#allocation8], 0
    %10 = vsyncpa [#allocation11], 0
    %11 = vsyncpa [#allocation9], 0
    // Predicated region
    $region2: #{tpu_custom_call.1} parent=1 // pred_check
      _
    $region3: #{tpu_custom_call.1} parent=1 // pred_check_branch
      %13 = sbr.rel (0) target = $region5
    $region4: #{tpu_custom_call.1} parent=1 // pred_region
      %s15 = ssub.s32 16, 16
      %16 = vsyncadd [#allocation8], %s15
      %s18 = sshll.u32 [#allocation7], 4
      %s19 = int_to_ptr.vmem [resolvable:$true] %s18
      %21 = dma.hbm_to_vmem [thread:$0]  %s0, 16, %s19, [#allocation8]
    $region5: #{tpu_custom_call.1} parent=1 // pred_fallthru
      _
    // Predicated region
    $region6: #{tpu_custom_call.1} parent=1 // pred_check
      _
    $region7: #{tpu_custom_call.1} parent=1 // pred_check_branch
      %23 = sbr.rel (0) target = $region9
    $region8: #{tpu_custom_call.1} parent=1 // pred_region
      %s25 = ssub.s32 64, 64
      %26 = vsyncadd [#allocation11], %s25
      %s28 = sshll.u32 [#allocation10], 4
      %s29 = int_to_ptr.vmem [resolvable:$true] %s28
      %31 = dma.hbm_to_vmem [thread:$0]  %s1, 64, %s29, [#allocation11]
    $region9: #{tpu_custom_call.1} parent=1 // pred_fallthru
      _
    // Predicated region
    $region10: #{tpu_custom_call.1} parent=1 // pred_check
      _
    $region11: #{tpu_custom_call.1} parent=1 // pred_check_branch
      %33 = sbr.rel (0) target = $region13
    $region12: #{tpu_custom_call.1} parent=1 // pred_region
      %34 = dma.done [#allocation8], 16
    $region13: #{tpu_custom_call.1} parent=1 // pred_fallthru
      _
    // Predicated region
    $region14: #{tpu_custom_call.1} parent=1 // pred_check
      _
    $region15: #{tpu_custom_call.1} parent=1 // pred_check_branch
      %36 = sbr.rel (0) target = $region17
    $region16: #{tpu_custom_call.1} parent=1 // pred_region
      %37 = dma.done [#allocation11], 64
    $region17: #{tpu_custom_call.1} parent=1 // pred_fallthru
      _
    %p39 = scmp.eq.s32.totalorder 0, 0
    // Predicated region
    $region18: #{tpu_custom_call.1} parent=1 // pred_check
      %p40 = pneg %p39
    $region19: #{tpu_custom_call.1} parent=1 // pred_check_branch
      %42 = sbr.rel (%p40) target = $region21
    $region20: #{tpu_custom_call.1} parent=1 // pred_region
      // Predicated region
      $region22: #{tpu_custom_call.1} parent=20 // pred_check
        _
      $region23: #{tpu_custom_call.1} parent=20 // pred_check_branch
        %44 = sbr.rel target = $region25
      $region24: #{tpu_custom_call.1} parent=20 // pred_region
        %45 = sst [smem:[#allocation15]] [#allocation14]
        %46 = sst [smem:[#allocation16]] [#allocation13]
      $region25: #{tpu_custom_call.1} parent=20 // pred_fallthru
        _
      %48 = shalt.err (0)
      %s50 = sshll.u32 [#allocation2], 4
      %s51 = int_to_ptr.vmem [resolvable:$true] %s50
      %53 = dma.hbm_to_vmem [thread:$0]  %s2, 1024, %s51, [#allocation6]
      %s54 = scalar_lea.sflag [#allocation6], 1
      // Predicated region
      $region26: #{tpu_custom_call.1} parent=20 // pred_check
        _
      $region27: #{tpu_custom_call.1} parent=20 // pred_check_branch
        %56 = sbr.rel target = $region29
      $region28: #{tpu_custom_call.1} parent=20 // pred_region
        %57 = sst [smem:[#allocation15]] [#allocation18]
        %58 = sst [smem:[#allocation16]] [#allocation17]
      $region29: #{tpu_custom_call.1} parent=20 // pred_fallthru
        _
      %60 = shalt.err (0)
      %s62 = sshll.u32 [#allocation3], 4
      %s63 = int_to_ptr.vmem [resolvable:$true] %s62
      %65 = dma.hbm_to_vmem [thread:$0]  %s3, 1024, %s63, %s54
      %v66 = vld [vmem:[#allocation7] sm:$0x1]
      %67 = vst [vmem:[#allocation5] sm:$0x1] %v66
      %s68 = smul.u32 4, 16
      %s69 = smul.u32 %s68, 1
      %s70 = sshll.u32 %s69, 4
      %71 = dma.done [#allocation6], %s70
      %s72 = sshll.u32 %s69, 4
      %73 = dma.done %s54, %s72
    $region21: #{tpu_custom_call.1} parent=1 // pred_fallthru
      _
    %v74 = vld [vmem:[#allocation10] sm:$0xf]
    %v75 = vld [vmem:[#allocation3] sm:$0xff]
    %v76 = vld [vmem:[#allocation3 + $0x8] sm:$0xff]
    %v77 = vld [vmem:[#allocation3 + $0x10] sm:$0xff]
    %v78 = vld [vmem:[#allocation3 + $0x18] sm:$0xff]
    %v79 = vld [vmem:[#allocation3 + $0x20] sm:$0xff]
    %v80 = vld [vmem:[#allocation3 + $0x28] sm:$0xff]
    %v81 = vld [vmem:[#allocation3 + $0x30] sm:$0xff]
    %v82 = vld [vmem:[#allocation3 + $0x38] sm:$0xff]
    %83 = vmatprep.subr.bf16.mxu0 0
    %84 = vmatpush1.bf16.msra.mxu0 %v75
    %85 = vmatprep.subr.bf16.mxu0 0
    %86 = vmatpush1.bf16.msra.mxu0 %v76
    %87 = vmatprep.subr.bf16.mxu0 0
    %88 = vmatpush1.bf16.msra.mxu0 %v77
    %89 = vmatprep.subr.bf16.mxu0 0
    %90 = vmatpush1.bf16.msra.mxu0 %v78
    %91 = vmatprep.subr.bf16.mxu0 0
    %92 = vmatpush1.bf16.msra.mxu0 %v79
    %93 = vmatprep.subr.bf16.mxu0 0
    %94 = vmatpush1.bf16.msra.mxu0 %v80
    %95 = vmatprep.subr.bf16.mxu0 0
    %96 = vmatpush1.bf16.msra.mxu0 %v81
    %97 = vmatprep.subr.bf16.mxu0 0
    %98 = vmatpush1.bf16.msra.mxu0 %v82
    %99 = vmatprep.subr.bf16.mxu0 0
    %100 = vmatpush1.bf16.msra.mxu0 0
    %101 = vmatprep.subr.bf16.mxu0 0
    %102 = vmatpush1.bf16.msra.mxu0 0
    %103 = vmatprep.subr.bf16.mxu0 0
    %104 = vmatpush1.bf16.msra.mxu0 0
    %105 = vmatprep.subr.bf16.mxu0 0
    %106 = vmatpush1.bf16.msra.mxu0 0
    %107 = vmatprep.subr.bf16.mxu0 0
    %108 = vmatpush1.bf16.msra.mxu0 0
    %109 = vmatprep.subr.bf16.mxu0 0
    %110 = vmatpush1.bf16.msra.mxu0 0
    %111 = vmatprep.subr.bf16.mxu0 0
    %112 = vmatpush1.bf16.msra.mxu0 0
    %113 = vmatprep.subr.bf16.mxu0 0
    %114 = vmatpush1.bf16.msra.mxu0 0
    %115 = vmatprep.mubr.bf16.mxu0 0
    %116 = vmatmul.mubr.bf16.gmra.mrb[0].mxu0 %v74
    %v117 = vpop.f32.mrb[0].mxu0
    %v118 = vadd.f32 0.0, %v117
    %v119 = vpop.f32.mrb[0].mxu0
    %v120 = vpop.f32.mrb[0].mxu0
    %v121 = vpop.f32.mrb[0].mxu0
    %122 = vdwg.mxu0
    %123 = vst [vmem:[#allocation4] sm:$0xff] %v118
    %v124 = vld [vmem:[#allocation2] sm:$0xff]
    %v125 = vld [vmem:[#allocation2 + $0x8] sm:$0xff]
    %v126 = vld [vmem:[#allocation2 + $0x10] sm:$0xff]
    %v127 = vld [vmem:[#allocation2 + $0x18] sm:$0xff]
    %v128 = vld [vmem:[#allocation2 + $0x20] sm:$0xff]
    %v129 = vld [vmem:[#allocation2 + $0x28] sm:$0xff]
    %v130 = vld [vmem:[#allocation2 + $0x30] sm:$0xff]
    %v131 = vld [vmem:[#allocation2 + $0x38] sm:$0xff]
    %v132 = vld [vmem:[#allocation5] sm:$0x1]
    loop: start=0, step=1, limit=8
    $region30: #{tpu_custom_call.1} parent=1 // loop_pre_header
      _
    $region31: #{tpu_custom_call.1} parent=1 // loop_header
      %s134 = sphi 0, %s138
      %p135 = scmp.ge.s32.totalorder %s134, 8
      %v139 = vphi %v132, %v183
    $region32: #{tpu_custom_call.1} parent=1 // loop_header_branch
      %137 = sbr.rel (%p135) target = $region36
    $region33: #{tpu_custom_call.1} parent=1 // loop_body
      %v140 = vpack.c.bf16 %v139, %v139
      %s141 = scalar_lea.vmem [#allocation4], %s134
      %v142 = vld [vmem:[%s141] sm:$0x1]
      %143 = vmatprep.subr.bf16.mxu0 0
      %144 = vmatpush1.bf16.msra.mxu0 %v124
      %145 = vmatprep.subr.bf16.mxu0 0
      %146 = vmatpush1.bf16.msra.mxu0 %v125
      %147 = vmatprep.subr.bf16.mxu0 0
      %148 = vmatpush1.bf16.msra.mxu0 %v126
      %149 = vmatprep.subr.bf16.mxu0 0
      %150 = vmatpush1.bf16.msra.mxu0 %v127
      %151 = vmatprep.subr.bf16.mxu0 0
      %152 = vmatpush1.bf16.msra.mxu0 %v128
      %153 = vmatprep.subr.bf16.mxu0 0
      %154 = vmatpush1.bf16.msra.mxu0 %v129
      %155 = vmatprep.subr.bf16.mxu0 0
      %156 = vmatpush1.bf16.msra.mxu0 %v130
      %157 = vmatprep.subr.bf16.mxu0 0
      %158 = vmatpush1.bf16.msra.mxu0 %v131
      %159 = vmatprep.subr.bf16.mxu0 0
      %160 = vmatpush1.bf16.msra.mxu0 0
      %161 = vmatprep.subr.bf16.mxu0 0
      %162 = vmatpush1.bf16.msra.mxu0 0
      %163 = vmatprep.subr.bf16.mxu0 0
      %164 = vmatpush1.bf16.msra.mxu0 0
      %165 = vmatprep.subr.bf16.mxu0 0
      %166 = vmatpush1.bf16.msra.mxu0 0
      %167 = vmatprep.subr.bf16.mxu0 0
      %168 = vmatpush1.bf16.msra.mxu0 0
      %169 = vmatprep.subr.bf16.mxu0 0
      %170 = vmatpush1.bf16.msra.mxu0 0
      %171 = vmatprep.subr.bf16.mxu0 0
      %172 = vmatpush1.bf16.msra.mxu0 0
      %173 = vmatprep.subr.bf16.mxu0 0
      %174 = vmatpush1.bf16.msra.mxu0 0
      %175 = vmatprep.mubr.bf16.mxu0 0
      %176 = vmatmul.mubr.bf16.gmra.mrb[0].mxu0 %v140
      %v177 = vpop.f32.mrb[0].mxu0
      %v178 = vadd.f32 %v142, %v177
      %v179 = vpop.f32.mrb[0].mxu0
      %v180 = vpop.f32.mrb[0].mxu0
      %v181 = vpop.f32.mrb[0].mxu0
      %182 = vdwg.mxu0
      %v183 = vmax.f32 %v178, 0.0001
      %s184 = scalar_lea.vmem [#allocation12], %s134
      %185 = vst [vmem:[%s184] sm:$0x1] %v183
    $region34: #{tpu_custom_call.1} parent=1 // loop_footer
      %s138 = sadd.s32 1, %s134
    $region35: #{tpu_custom_call.1} parent=1 // loop_footer_branch
      %133 = sbr.rel target = $region31
    $region36: #{tpu_custom_call.1} parent=1 // loop_exit
      _
    %186 = vst [vmem:[#allocation5] sm:$0x1] %v139
    // Predicated region
    $region37: #{tpu_custom_call.1} parent=1 // pred_check
      _
    $region38: #{tpu_custom_call.1} parent=1 // pred_check_branch
      %188 = sbr.rel (0) target = $region40
    $region39: #{tpu_custom_call.1} parent=1 // pred_region
      %s190 = ssub.s32 128, 128
      %191 = vsyncadd [#allocation9], %s190
      %s193 = sshll.u32 [#allocation12], 4
      %s194 = int_to_ptr.vmem [resolvable:$true] %s193
      %196 = dma.vmem_to_hbm [thread:$0]  %s194, 128, %s4, [#allocation9]
    $region40: #{tpu_custom_call.1} parent=1 // pred_fallthru
      _
    // Predicated region
    $region41: #{tpu_custom_call.1} parent=1 // pred_check
      _
    $region42: #{tpu_custom_call.1} parent=1 // pred_check_branch
      %198 = sbr.rel (0) target = $region44
    $region43: #{tpu_custom_call.1} parent=1 // pred_region
      %199 = dma.done [#allocation9], 128
    $region44: #{tpu_custom_call.1} parent=1 // pred_fallthru
      _
    %200 = vsyncpa [#allocation8], 1
    %201 = vsyncpa [#allocation11], 1
    %202 = vsyncpa [#allocation9], 1
  %203 = vsyncmov [#allocation6]
  %s204 = vpop.sfrf %203
  %p205 = scmp.eq.s32.totalorder %s204, 0
  %p206 = pneg %p205
  %208 = shalt.err (%p206)
  %s209 = scalar_lea.sflag [#allocation6], 1
  %210 = vsyncmov %s209
  %s211 = vpop.sfrf %210
  %p212 = scmp.eq.s32.totalorder %s211, 0
  %p213 = pneg %p212
  %215 = shalt.err (%p213)

</llo_original>
